<compile_context>
chip_gen: v7x
topology: tpu7x:2x2x1
jax: 0.10.0
libtpu: 0.0.40
codegen_flags: <defaults>
</compile_context>

<pallas_src>
import functools

import jax
import jax.numpy as jnp
from jax.experimental import pallas as pl
from jax.experimental.pallas import tpu as pltpu

_LANE = 128
_SUBLANE = 8


def _round_up(n, m):
    return ((n + m - 1) // m) * m


def _vmem_budget_bytes():
    """~75% of this generation's VMEM (48 MiB v7x, 96 MiB v5e/v6e)."""
    cap = 64 << 20  # conservative fallback (v7x per-TC)
    try:
        info = pltpu.get_tpu_info()
        cap = int(getattr(info, "vmem_capacity_bytes", cap))
    except Exception:
        pass
    return max(int(cap * 3 // 4), 16 << 20)


def _choose_tile_b(bp, input_dim, hp, n_out, cbytes, obytes, tile_b_max, budget):
    """Largest batch tile (multiple of 8) whose per-step traffic fits VMEM."""
    # Resident operands (index_map always (0,0)) are still double-buffered by
    # the BlockSpec pipeline; count them so large hidden dims don't blow VMEM.
    # TODO(synk): pl.Buffered(1) on the constant-index operands would halve this.
    resident = 2 * (input_dim * hp * cbytes + hp * n_out * cbytes + (hp + n_out) * 4)
    avail = max(budget - resident, 2 << 20)

    tile = min(bp, _round_up(max(tile_b_max, _SUBLANE), _SUBLANE))
    while tile > _SUBLANE:
        per_step = (2 * tile * input_dim * 4          # x tiles (double-buffered, f32)
                    + 2 * tile * n_out * obytes       # mu/std out tiles (double-buffered)
                    + tile * (hp + n_out) * 4)        # f32 intermediates (h, head)
        if per_step <= avail:
            break
        tile = max(_round_up(tile // 2, _SUBLANE), _SUBLANE)

    # Give v7x's two TensorCores at least two grid steps to split.
    if tile >= bp and bp > _SUBLANE:
        tile = _round_up(pl.cdiv(bp, 2), _SUBLANE)
    return tile


def _encoder_kernel(x_ref, w1_ref, b1_ref, wh_ref, bh_ref, mu_ref, std_ref, *, lp):
    """One batch tile: h = relu(x@W1+b1); mu = head[:, :lp]; std = exp(head[:, lp:])."""
    # Cast activations to the (pre-cast, padded) weight dtype right before the MXU.
    x = x_ref[...].astype(w1_ref.dtype)
    h = jnp.dot(x, w1_ref[...], preferred_element_type=jnp.float32) + b1_ref[...]
    h = jnp.maximum(h, 0.0).astype(wh_ref.dtype)
    # Fused lane-dense head matmul producing [mu | log_std], each lp wide (128-aligned).
    head = jnp.dot(h, wh_ref[...], preferred_element_type=jnp.float32) + bh_ref[...]
    mu_ref[...] = head[:, :lp].astype(mu_ref.dtype)
    std_ref[...] = jnp.exp(jnp.clip(head[:, lp:], -10.0, 10.0)).astype(std_ref.dtype)


def prepare_params(params, compute_dtype=jnp.bfloat16):
    """One-time weight prep: pad to lane multiples, fuse heads, cast matmul dtype.

    Returns (w1_p, b1_p, wh_p, bh_p) ready to pass to `encoder_forward`.
    Do this once (e.g. after loading params) and reuse across forward calls.
    """
    w1, b1, wmu, bmu, ws, bs = params
    input_dim, hidden_dim = w1.shape
    latent_dim = wmu.shape[1]
    hp = _round_up(hidden_dim, _LANE)
    lp = _round_up(latent_dim, _LANE)

    # W1: rows stay unpadded (match x's native last dim); columns padded to 128.
    w1_p = jnp.pad(w1, ((0, 0), (0, hp - hidden_dim))).astype(compute_dtype)
    b1_p = jnp.pad(b1.reshape(1, -1), ((0, 0), (0, hp - hidden_dim))).astype(jnp.float32)

    # Heads: pad each to (hp, lp) so mu / log_std split at a static 128-aligned column.
    wmu_p = jnp.pad(wmu, ((0, hp - hidden_dim), (0, lp - latent_dim)))
    ws_p = jnp.pad(ws, ((0, hp - hidden_dim), (0, lp - latent_dim)))
    wh_p = jnp.concatenate([wmu_p, ws_p], axis=1).astype(compute_dtype)      # (hp, 2*lp)
    bmu_p = jnp.pad(bmu.reshape(1, -1), ((0, 0), (0, lp - latent_dim)))
    bs_p = jnp.pad(bs.reshape(1, -1), ((0, 0), (0, lp - latent_dim)))
    bh_p = jnp.concatenate([bmu_p, bs_p], axis=1).astype(jnp.float32)        # (1, 2*lp)
    return (w1_p, b1_p, wh_p, bh_p)


@functools.partial(jax.jit, static_argnames=("latent_dim", "tile_b_max", "out_dtype"))
def encoder_forward(x, prepared, *, latent_dim, tile_b_max=2048, out_dtype=jnp.float32):
    """Fused Gaussian-encoder forward.  Returns (mu, std), each (batch, latent)."""
    w1_p, b1_p, wh_p, bh_p = prepared
    batch, input_dim = x.shape
    assert w1_p.shape[0] == input_dim, "prepared params do not match x's input_dim"
    hp = w1_p.shape[1]
    n_out = wh_p.shape[1]            # == 2 * lp
    lp = n_out // 2
    assert latent_dim <= lp

    cbytes = jnp.dtype(w1_p.dtype).itemsize
    obytes = jnp.dtype(out_dtype).itemsize

    # Only the batch axis is padded, and only up to a multiple of 8.
    bp = _round_up(batch, _SUBLANE)
    x_in = x if bp == batch else jnp.pad(x, ((0, bp - batch), (0, 0)))

    budget = _vmem_budget_bytes()
    tile_b = _choose_tile_b(bp, input_dim, hp, n_out, cbytes, obytes, tile_b_max, budget)
    grid = (pl.cdiv(bp, tile_b),)

    mu_p, std_p = pl.pallas_call(
        functools.partial(_encoder_kernel, lp=lp),
        out_shape=(jax.ShapeDtypeStruct((bp, lp), out_dtype),
                   jax.ShapeDtypeStruct((bp, lp), out_dtype)),
        grid=grid,
        in_specs=[
            pl.BlockSpec((tile_b, input_dim), lambda i: (i, 0)),  # x: tiled over batch
            pl.BlockSpec((input_dim, hp), lambda i: (0, 0)),      # W1: resident
            pl.BlockSpec((1, hp), lambda i: (0, 0)),              # b1: resident (f32)
            pl.BlockSpec((hp, n_out), lambda i: (0, 0)),          # fused head weight
            pl.BlockSpec((1, n_out), lambda i: (0, 0)),           # fused head bias (f32)
        ],
        out_specs=(pl.BlockSpec((tile_b, lp), lambda i: (i, 0)),
                   pl.BlockSpec((tile_b, lp), lambda i: (i, 0))),
        compiler_params=pltpu.CompilerParams(
            dimension_semantics=("parallel",),   # shard batch over v7x's 2 TCs
            vmem_limit_bytes=int(budget),
        ),
    )(x_in, w1_p, b1_p, wh_p, bh_p)

    mu = mu_p[:batch, :latent_dim]
    std = std_p[:batch, :latent_dim]
    return mu, std


def init_params(key, input_dim, hidden_dim, latent_dim):
    k1, k2, k3 = jax.random.split(key, 3)
    scale1 = 1.0 / jnp.sqrt(input_dim)
    scale2 = 1.0 / jnp.sqrt(hidden_dim)
    w1 = jax.random.normal(k1, (input_dim, hidden_dim), jnp.float32) * scale1
    b1 = jnp.zeros((1, hidden_dim), jnp.float32)
    wmu = jax.random.normal(k2, (hidden_dim, latent_dim), jnp.float32) * scale2
    bmu = jnp.zeros((1, latent_dim), jnp.float32)
    ws = jax.random.normal(k3, (hidden_dim, latent_dim), jnp.float32) * scale2
    bs = jnp.zeros((1, latent_dim), jnp.float32)
    return (w1, b1, wmu, bmu, ws, bs)


def reference_forward(x, params):
    w1, b1, wmu, bmu, ws, bs = params
    h = jnp.maximum(x @ w1 + b1.reshape(1, -1), 0.0)
    mu = h @ wmu + bmu.reshape(1, -1)
    std = jnp.exp(jnp.clip(h @ ws + bs.reshape(1, -1), -10.0, 10.0))
    return mu, std


if __name__ == "__main__":
    # Small shapes consistent with Encoder(input_dim, latent_dim)
    batch, input_dim, hidden_dim, latent_dim = 8, 16, 32, 8

    key = jax.random.PRNGKey(0)
    kx, kp = jax.random.split(key)
    x = jax.random.normal(kx, (batch, input_dim), jnp.float32)
    params = init_params(kp, input_dim, hidden_dim, latent_dim)
    mu_ref, std_ref = reference_forward(x, params)

    # 1) f32 compute path: tight match against the pure-JAX reference.
    prep32 = prepare_params(params, compute_dtype=jnp.float32)
    mu32, std32 = jax.block_until_ready(
        encoder_forward(x, prep32, latent_dim=latent_dim))
    assert mu32.shape == (batch, latent_dim) and std32.shape == (batch, latent_dim)
    assert jnp.allclose(mu32, mu_ref, atol=1e-5, rtol=1e-5)
    assert jnp.allclose(std32, std_ref, atol=1e-5, rtol=1e-5)
    assert bool(jnp.all(std32 > 0.0))

    # 2) bf16 matmul operands (v6e/v7x fast path), f32 accumulate/elementwise.
    prep16 = prepare_params(params, compute_dtype=jnp.bfloat16)
    mu16, std16 = jax.block_until_ready(
        encoder_forward(x, prep16, latent_dim=latent_dim))
    assert jnp.allclose(mu16, mu_ref, atol=5e-2, rtol=5e-2)
    assert jnp.allclose(std16, std_ref, atol=5e-2, rtol=5e-2)
    assert bool(jnp.all(std16 > 0.0))

    # 2b) bf16 output writeback (halves output HBM traffic).
    mu16b, std16b = jax.block_until_ready(
        encoder_forward(x, prep16, latent_dim=latent_dim, out_dtype=jnp.bfloat16))
    assert mu16b.dtype == jnp.bfloat16 and std16b.dtype == jnp.bfloat16
    assert jnp.allclose(mu16b.astype(jnp.float32), mu_ref, atol=1e-1, rtol=1e-1)
    assert jnp.allclose(std16b.astype(jnp.float32), std_ref, atol=1e-1, rtol=1e-1)

    # 3) Multi-step batch grid (exercises tiling + partial last tile).
    xb = jax.random.normal(jax.random.PRNGKey(1), (200, input_dim), jnp.float32)
    mub, stdb = jax.block_until_ready(
        encoder_forward(xb, prep32, latent_dim=latent_dim, tile_b_max=64))
    mub_ref, stdb_ref = reference_forward(xb, params)
    assert jnp.allclose(mub, mub_ref, atol=1e-5, rtol=1e-5)
    assert jnp.allclose(stdb, stdb_ref, atol=1e-5, rtol=1e-5)

    # 4) Ragged batch (not a multiple of 8): exercises minimal batch padding.
    xo = jax.random.normal(jax.random.PRNGKey(2), (13, input_dim), jnp.float32)
    muo, stdo = jax.block_until_ready(
        encoder_forward(xo, prep32, latent_dim=latent_dim))
    muo_ref, stdo_ref = reference_forward(xo, params)
    assert muo.shape == (13, latent_dim)
    assert jnp.allclose(muo, muo_ref, atol=1e-5, rtol=1e-5)
    assert jnp.allclose(stdo, stdo_ref, atol=1e-5, rtol=1e-5)

    print("KERNEL_OK")
</pallas_src>

<mosaic_0001>
module attributes {stable_mosaic.version = 11 : i64} {
  func.func @_encoder_kernel(%arg0: i32, %arg1: memref<8x16xf32, #tpu.memory_space<vmem>>, %arg2: memref<16x128xf32, #tpu.memory_space<vmem>>, %arg3: memref<1x128xf32, #tpu.memory_space<vmem>>, %arg4: memref<128x256xf32, #tpu.memory_space<vmem>>, %arg5: memref<1x256xf32, #tpu.memory_space<vmem>>, %arg6: memref<8x128xf32, #tpu.memory_space<vmem>>, %arg7: memref<8x128xf32, #tpu.memory_space<vmem>>) attributes {dimension_semantics = [#tpu.dimension_semantics<parallel>], iteration_bounds = array<i64: 1>, scalar_prefetch = 0 : i64, scratch_operands = 0 : i64, tpu.core_type = #tpu.core_type<tc>, window_params = [{transform_indices = @transform_0, window_bounds = array<i64: 8, 16>}, {pipeline_mode = #tpu.pipeline_mode<synchronous>, transform_indices = @transform_1, window_bounds = array<i64: 16, 128>}, {pipeline_mode = #tpu.pipeline_mode<synchronous>, transform_indices = @transform_2, window_bounds = array<i64: 1, 128>}, {pipeline_mode = #tpu.pipeline_mode<synchronous>, transform_indices = @transform_3, window_bounds = array<i64: 128, 256>}, {pipeline_mode = #tpu.pipeline_mode<synchronous>, transform_indices = @transform_4, window_bounds = array<i64: 1, 256>}, {transform_indices = @transform_5, window_bounds = array<i64: 8, 128>}, {transform_indices = @transform_6, window_bounds = array<i64: 8, 128>}]} {
    %c0 = arith.constant 0 : index
    %c0_0 = arith.constant 0 : index
    %0 = vector.load %arg1[%c0, %c0_0] : memref<8x16xf32, #tpu.memory_space<vmem>>, vector<8x16xf32>
    %c0_1 = arith.constant 0 : index
    %c0_2 = arith.constant 0 : index
    %1 = vector.load %arg2[%c0_1, %c0_2] : memref<16x128xf32, #tpu.memory_space<vmem>>, vector<16x128xf32>
    %cst = arith.constant dense<0.000000e+00> : vector<8x128xf32>
    %2 = tpu.matmul %0, %1, %cst {dimension_numbers = #tpu.dot_dimension_numbers<[1], [0], [0], [1], [0, 0, 1, 1], [], []>} : vector<8x16xf32>, vector<16x128xf32>, vector<8x128xf32> -> vector<8x128xf32>
    %c0_3 = arith.constant 0 : index
    %c0_4 = arith.constant 0 : index
    %3 = vector.load %arg3[%c0_3, %c0_4] : memref<1x128xf32, #tpu.memory_space<vmem>>, vector<1x128xf32>
    %4 = vector.broadcast %3 : vector<1x128xf32> to vector<8x128xf32>
    %5 = arith.addf %2, %4 : vector<8x128xf32>
    %cst_5 = arith.constant 0.000000e+00 : f32
    %6 = vector.broadcast %cst_5 : f32 to vector<8x128xf32>
    %7 = arith.maximumf %5, %6 : vector<8x128xf32>
    %c0_6 = arith.constant 0 : index
    %c0_7 = arith.constant 0 : index
    %8 = vector.load %arg4[%c0_6, %c0_7] : memref<128x256xf32, #tpu.memory_space<vmem>>, vector<128x256xf32>
    %cst_8 = arith.constant dense<0.000000e+00> : vector<8x256xf32>
    %9 = tpu.matmul %7, %8, %cst_8 {dimension_numbers = #tpu.dot_dimension_numbers<[1], [0], [0], [1], [0, 0, 1, 1], [], []>} : vector<8x128xf32>, vector<128x256xf32>, vector<8x256xf32> -> vector<8x256xf32>
    %c0_9 = arith.constant 0 : index
    %c0_10 = arith.constant 0 : index
    %10 = vector.load %arg5[%c0_9, %c0_10] : memref<1x256xf32, #tpu.memory_space<vmem>>, vector<1x256xf32>
    %11 = vector.broadcast %10 : vector<1x256xf32> to vector<8x256xf32>
    %12 = arith.addf %9, %11 : vector<8x256xf32>
    %13 = vector.extract_strided_slice %12 {offsets = [0, 0], sizes = [8, 128], strides = [1, 1]} : vector<8x256xf32> to vector<8x128xf32>
    %c0_11 = arith.constant 0 : index
    %c0_12 = arith.constant 0 : index
    %14 = vector.load %arg6[%c0_11, %c0_12] : memref<8x128xf32, #tpu.memory_space<vmem>>, vector<8x128xf32>
    tpu.vector_store %arg6[%c0_11, %c0_12], %13 {strides = array<i32>} : memref<8x128xf32, #tpu.memory_space<vmem>>, vector<8x128xf32>,
    %15 = vector.extract_strided_slice %12 {offsets = [0, 128], sizes = [8, 128], strides = [1, 1]} : vector<8x256xf32> to vector<8x128xf32>
    %cst_13 = arith.constant -1.000000e+01 : f32
    %cst_14 = arith.constant 1.000000e+01 : f32
    %16 = vector.broadcast %cst_13 : f32 to vector<8x128xf32>
    %17 = arith.maximumf %16, %15 : vector<8x128xf32>
    %18 = vector.broadcast %cst_14 : f32 to vector<8x128xf32>
    %19 = arith.minimumf %18, %17 : vector<8x128xf32>
    %20 = math.exp %19 : vector<8x128xf32>
    %c0_15 = arith.constant 0 : index
    %c0_16 = arith.constant 0 : index
    %21 = vector.load %arg7[%c0_15, %c0_16] : memref<8x128xf32, #tpu.memory_space<vmem>>, vector<8x128xf32>
    tpu.vector_store %arg7[%c0_15, %c0_16], %20 {strides = array<i32>} : memref<8x128xf32, #tpu.memory_space<vmem>>, vector<8x128xf32>,
    return
  }
  func.func @transform_0(%arg0: i32) -> (i32, i32) {
    %c0_i32 = arith.constant 0 : i32
    %c0_i32_0 = arith.constant 0 : i32
    return %arg0, %c0_i32 : i32, i32
  }
  func.func @transform_1(%arg0: i32) -> (i32, i32) {
    %c0_i32 = arith.constant 0 : i32
    %c0_i32_0 = arith.constant 0 : i32
    %c0_i32_1 = arith.constant 0 : i32
    return %c0_i32, %c0_i32_0 : i32, i32
  }
  func.func @transform_2(%arg0: i32) -> (i32, i32) {
    %c0_i32 = arith.constant 0 : i32
    %c0_i32_0 = arith.constant 0 : i32
    %c0_i32_1 = arith.constant 0 : i32
    return %c0_i32, %c0_i32_0 : i32, i32
  }
  func.func @transform_3(%arg0: i32) -> (i32, i32) {
    %c0_i32 = arith.constant 0 : i32
    %c0_i32_0 = arith.constant 0 : i32
    %c0_i32_1 = arith.constant 0 : i32
    return %c0_i32, %c0_i32_0 : i32, i32
  }
  func.func @transform_4(%arg0: i32) -> (i32, i32) {
    %c0_i32 = arith.constant 0 : i32
    %c0_i32_0 = arith.constant 0 : i32
    %c0_i32_1 = arith.constant 0 : i32
    return %c0_i32, %c0_i32_0 : i32, i32
  }
  func.func @transform_5(%arg0: i32) -> (i32, i32) {
    %c0_i32 = arith.constant 0 : i32
    %c0_i32_0 = arith.constant 0 : i32
    return %arg0, %c0_i32 : i32, i32
  }
  func.func @transform_6(%arg0: i32) -> (i32, i32) {
    %c0_i32 = arith.constant 0 : i32
    %c0_i32_0 = arith.constant 0 : i32
    return %arg0, %c0_i32 : i32, i32
  }
}

</mosaic_0001>

<llo_original>
// kernel: encoder_forward.1
$region0: #{encoder_forward.1}
  #allocation0 [shape = 'u32[]', space=smem, size = 0x4, offset = 0x4, fixed_abs, tag = 'smem constant byte address 0x4 - core index']
  #allocation1 [shape = 'u32[144,128]{1,0:T(1,128)}', space=vmem, size = 0x12000, scoped, tag = 'internal scratch']
  %s0 = inlined_call_operand.hbm [shape: f32[8,16], index: 0, kind: input, shape index: {}]
  %s1 = inlined_call_operand.hbm [shape: f32[16,128], index: 1, kind: input, shape index: {}]
  %s2 = inlined_call_operand.vmem [shape: f32[1,128], index: 2, kind: input, shape index: {}]
  %s3 = inlined_call_operand.hbm [shape: f32[128,256], index: 3, kind: input, shape index: {}]
  %s4 = inlined_call_operand.vmem [shape: f32[1,256], index: 4, kind: input, shape index: {}]
  %s5 = inlined_call_operand.hbm [shape: f32[8,128], index: 5, kind: output, shape index: {0}]
  %s6 = inlined_call_operand.hbm [shape: f32[8,128], index: 6, kind: output, shape index: {1}]
  %7 = xla_tuple %s5, %s6
  %s8 = sld [smem:[#allocation0]]
  $region50: #{encoder_forward.1} parent=0
    _
  %s10 = ssub.s32 1, %s8
  %s11 = scalar_select 0, %s10, %s8
  $region1: #{encoder_forward.1} parent=0
    #allocation2 [shape = 'u8[4096]{0}', space=vmem, size = 0x1000, scoped, tag = 'input window, operand 0, single buffered']
    #allocation3 [shape = 's32[1]{0}', space=sflag, size = 0x4, scoped, tag = 'scoped memory for encoder_forward.1']
    #allocation4 [shape = 's32[1]{0}', space=sflag, size = 0x4, scoped, tag = 'scoped memory for encoder_forward.1']
    #allocation5 [shape = 'u8[8192]{0}', space=vmem, size = 0x2000, scoped, tag = 'input window, operand 1, single buffered']
    #allocation6 [shape = 's32[1]{0}', space=sflag, size = 0x4, scoped, tag = 'scoped memory for encoder_forward.1']
    #allocation7 [shape = 'u8[131072]{0}', space=vmem, size = 0x20000, scoped, tag = 'input window, operand 3, single buffered']
    #allocation8 [shape = 'u8[4096]{0}', space=vmem, size = 0x1000, scoped, tag = 'output window, operand 0, single buffered']
    #allocation9 [shape = 'u8[4096]{0}', space=vmem, size = 0x1000, scoped, tag = 'output window, operand 1, single buffered']
    #allocation10 [shape = 's32[1]{0}', space=sflag, size = 0x4, scoped, tag = 'scoped memory for encoder_forward.1']
    %12 = vsyncpa [#allocation3], 0
    %13 = vsyncpa [#allocation6], 0
    %14 = vsyncpa [#allocation4], 0
    %15 = vsyncpa [#allocation10], 0
    // Predicated region
    $region2: #{encoder_forward.1} parent=1 // pred_check
      _
    $region3: #{encoder_forward.1} parent=1 // pred_check_branch
      %17 = sbr.rel (0) target = $region5
    $region4: #{encoder_forward.1} parent=1 // pred_region
      %s19 = ssub.s32 128, 128
      %20 = vsyncadd [#allocation3], %s19
      %s22 = sshll.u32 [#allocation2], 4
      %s23 = int_to_ptr.vmem [resolvable:$true] %s22
      %25 = dma.hbm_to_vmem [thread:$0]  %s0, 128, %s23, [#allocation3]
    $region5: #{encoder_forward.1} parent=1 // pred_fallthru
      _
    // Predicated region
    $region6: #{encoder_forward.1} parent=1 // pred_check
      _
    $region7: #{encoder_forward.1} parent=1 // pred_check_branch
      %27 = sbr.rel (0) target = $region9
    $region8: #{encoder_forward.1} parent=1 // pred_region
      %s29 = ssub.s32 256, 256
      %30 = vsyncadd [#allocation6], %s29
      %s31 = sshll.u32 [#allocation5], 4
      %s32 = int_to_ptr.vmem [resolvable:$true] %s31
      %37 = dma.hbm_to_vmem [thread:$0]  %s1, 256, %s32, [#allocation6], 128, 128, 8
    $region9: #{encoder_forward.1} parent=1 // pred_fallthru
      _
    // Predicated region
    $region10: #{encoder_forward.1} parent=1 // pred_check
      _
    $region11: #{encoder_forward.1} parent=1 // pred_check_branch
      %39 = sbr.rel (0) target = $region13
    $region12: #{encoder_forward.1} parent=1 // pred_region
      _
    $region13: #{encoder_forward.1} parent=1 // pred_fallthru
      _
    // Predicated region
    $region14: #{encoder_forward.1} parent=1 // pred_check
      _
    $region15: #{encoder_forward.1} parent=1 // pred_check_branch
      %41 = sbr.rel (0) target = $region17
    $region16: #{encoder_forward.1} parent=1 // pred_region
      %s43 = ssub.s32 4096, 4096
      %44 = vsyncadd [#allocation6], %s43
      %s45 = sshll.u32 [#allocation7], 4
      %s46 = int_to_ptr.vmem [resolvable:$true] %s45
      %51 = dma.hbm_to_vmem [thread:$0]  %s3, 4096, %s46, [#allocation6], 256, 256, 16
    $region17: #{encoder_forward.1} parent=1 // pred_fallthru
      _
    // Predicated region
    $region18: #{encoder_forward.1} parent=1 // pred_check
      _
    $region19: #{encoder_forward.1} parent=1 // pred_check_branch
      %53 = sbr.rel (0) target = $region21
    $region20: #{encoder_forward.1} parent=1 // pred_region
      _
    $region21: #{encoder_forward.1} parent=1 // pred_fallthru
      _
    // Predicated region
    $region22: #{encoder_forward.1} parent=1 // pred_check
      _
    $region23: #{encoder_forward.1} parent=1 // pred_check_branch
      %55 = sbr.rel (0) target = $region25
    $region24: #{encoder_forward.1} parent=1 // pred_region
      %56 = dma.done [#allocation3], 128
    $region25: #{encoder_forward.1} parent=1 // pred_fallthru
      _
    // Predicated region
    $region26: #{encoder_forward.1} parent=1 // pred_check
      _
    $region27: #{encoder_forward.1} parent=1 // pred_check_branch
      %58 = sbr.rel (0) target = $region29
    $region28: #{encoder_forward.1} parent=1 // pred_region
      %59 = dma.done [#allocation6], 256
    $region29: #{encoder_forward.1} parent=1 // pred_fallthru
      _
    // Predicated region
    $region30: #{encoder_forward.1} parent=1 // pred_check
      _
    $region31: #{encoder_forward.1} parent=1 // pred_check_branch
      %61 = sbr.rel (0) target = $region33
    $region32: #{encoder_forward.1} parent=1 // pred_region
      %62 = dma.done [#allocation6], 4096
    $region33: #{encoder_forward.1} parent=1 // pred_fallthru
      _
    %v63 = vld [vmem:[#allocation2] sm:$0xff]
    %v64 = vld [vmem:[#allocation5] sm:$0xff]
    %v65 = vld [vmem:[#allocation5 + $0x8] sm:$0xff]
    %v66 = vld [vmem:[%s2] sm:$0x1]
    %v68 = vlaneseq
    %v69 = vshrl.u32 %v68, 7
    %v70 = vsub.s32 0, %v69
    %v71 = vrot.slane %v66, %v70
    %vm73 = vcmask 130048
    %v75 = vsel %vm73, %v63, 0
    %77 = vmatprep.subr.mxu0 0.0
    %78 = vmatpush1.msra.mxu0 %v64
    %79 = vmatprep.subr.mxu0 0.0
    %80 = vmatpush1.msra.mxu0 %v65
    %81 = vmatprep.subr.mxu0 0.0
    %82 = vmatpush1.msra.mxu0 0.0
    %83 = vmatprep.subr.mxu0 0.0
    %84 = vmatpush1.msra.mxu0 0.0
    %85 = vmatprep.subr.mxu0 0.0
    %86 = vmatpush1.msra.mxu0 0.0
    %87 = vmatprep.subr.mxu0 0.0
    %88 = vmatpush1.msra.mxu0 0.0
    %89 = vmatprep.subr.mxu0 0.0
    %90 = vmatpush1.msra.mxu0 0.0
    %91 = vmatprep.subr.mxu0 0.0
    %92 = vmatpush1.msra.mxu0 0.0
    %93 = vmatprep.subr.mxu0 0.0
    %94 = vmatpush1.msra.mxu0 0.0
    %95 = vmatprep.subr.mxu0 0.0
    %96 = vmatpush1.msra.mxu0 0.0
    %97 = vmatprep.subr.mxu0 0.0
    %98 = vmatpush1.msra.mxu0 0.0
    %99 = vmatprep.subr.mxu0 0.0
    %100 = vmatpush1.msra.mxu0 0.0
    %101 = vmatprep.subr.mxu0 0.0
    %102 = vmatpush1.msra.mxu0 0.0
    %103 = vmatprep.subr.mxu0 0.0
    %104 = vmatpush1.msra.mxu0 0.0
    %105 = vmatprep.subr.mxu0 0.0
    %106 = vmatpush1.msra.mxu0 0.0
    %107 = vmatprep.subr.mxu0 0.0
    %108 = vmatpush1.msra.mxu0 0.0
    %109 = vmatprep.subr.mxu0 0.0
    %110 = vmatpush1.msra.mxu0 0.0
    %111 = vmatprep.subr.mxu0 0.0
    %112 = vmatpush1.msra.mxu0 0.0
    %113 = vmatprep.subr.mxu0 0.0
    %114 = vmatpush1.msra.mxu0 0.0
    %115 = vmatprep.subr.mxu0 0.0
    %116 = vmatpush1.msra.mxu0 0.0
    %117 = vmatprep.subr.mxu0 0.0
    %118 = vmatpush1.msra.mxu0 0.0
    %119 = vmatprep.subr.mxu0 0.0
    %120 = vmatpush1.msra.mxu0 0.0
    %121 = vmatprep.subr.mxu0 0.0
    %122 = vmatpush1.msra.mxu0 0.0
    %123 = vmatprep.subr.mxu0 0.0
    %124 = vmatpush1.msra.mxu0 0.0
    %125 = vmatprep.subr.mxu0 0.0
    %126 = vmatpush1.msra.mxu0 0.0
    %127 = vmatprep.subr.mxu0 0.0
    %128 = vmatpush1.msra.mxu0 0.0
    %129 = vmatprep.subr.mxu0 0.0
    %130 = vmatpush1.msra.mxu0 0.0
    %131 = vmatprep.subr.mxu0 0.0
    %132 = vmatpush1.msra.mxu0 0.0
    %133 = vmatprep.subr.mxu0 0.0
    %134 = vmatpush1.msra.mxu0 0.0
    %135 = vmatprep.subr.mxu0 0.0
    %136 = vmatpush1.msra.mxu0 0.0
    %137 = vmatprep.subr.mxu0 0.0
    %138 = vmatpush1.msra.mxu0 0.0
    %139 = vmatprep.subr.mxu0 0.0
    %140 = vmatpush1.msra.mxu0 0.0
    %141 = vmatprep.mubr.f32.mxu0 0.0
    %142 = vmatmul.mubr.f32.gmra.mrb[0].mxu0 %v75
    %v143 = vpop.f32.mrb[0].mxu0
    %v144 = vadd.f32 %v71, %v143
    %v145 = vpop.f32.mrb[0].mxu0
    %146 = vdwg.mxu0
    %v147 = vmax.f32 %v144, 0.0
    %v148 = vld [vmem:[#allocation7] sm:$0xff]
    %v149 = vld [vmem:[#allocation7 + $0x8] sm:$0xff]
    %v150 = vld [vmem:[#allocation7 + $0x10] sm:$0xff]
    %v151 = vld [vmem:[#allocation7 + $0x18] sm:$0xff]
    %v152 = vld [vmem:[#allocation7 + $0x20] sm:$0xff]
    %v153 = vld [vmem:[#allocation7 + $0x28] sm:$0xff]
    %v154 = vld [vmem:[#allocation7 + $0x30] sm:$0xff]
    %v155 = vld [vmem:[#allocation7 + $0x38] sm:$0xff]
    %v156 = vld [vmem:[#allocation7 + $0x40] sm:$0xff]
    %v157 = vld [vmem:[#allocation7 + $0x48] sm:$0xff]
    %v158 = vld [vmem:[#allocation7 + $0x50] sm:$0xff]
    %v159 = vld [vmem:[#allocation7 + $0x58] sm:$0xff]
    %v160 = vld [vmem:[#allocation7 + $0x60] sm:$0xff]
    %v161 = vld [vmem:[#allocation7 + $0x68] sm:$0xff]
    %v162 = vld [vmem:[#allocation7 + $0x70] sm:$0xff]
    %v163 = vld [vmem:[#allocation7 + $0x78] sm:$0xff]
    %v164 = vld [vmem:[#allocation7 + $0x80] sm:$0xff]
    %v165 = vld [vmem:[#allocation7 + $0x88] sm:$0xff]
    %v166 = vld [vmem:[#allocation7 + $0x90] sm:$0xff]
    %v167 = vld [vmem:[#allocation7 + $0x98] sm:$0xff]
    %v168 = vld [vmem:[#allocation7 + $0xa0] sm:$0xff]
    %v169 = vld [vmem:[#allocation7 + $0xa8] sm:$0xff]
    %v170 = vld [vmem:[#allocation7 + $0xb0] sm:$0xff]
    %v171 = vld [vmem:[#allocation7 + $0xb8] sm:$0xff]
    %v172 = vld [vmem:[#allocation7 + $0xc0] sm:$0xff]
    %v173 = vld [vmem:[#allocation7 + $0xc8] sm:$0xff]
    %v174 = vld [vmem:[#allocation7 + $0xd0] sm:$0xff]
    %v175 = vld [vmem:[#allocation7 + $0xd8] sm:$0xff]
    %v176 = vld [vmem:[#allocation7 + $0xe0] sm:$0xff]
    %v177 = vld [vmem:[#allocation7 + $0xe8] sm:$0xff]
    %v178 = vld [vmem:[#allocation7 + $0xf0] sm:$0xff]
    %v179 = vld [vmem:[#allocation7 + $0xf8] sm:$0xff]
    %v180 = vld [vmem:[%s4] sm:$0x3]
    %v182 = vlaneseq
    %v183 = vshrl.u32 %v182, 7
    %v184 = vsub.s32 0, %v183
    %v185 = vrot.slane %v180, %v184
    %v186 = vlaneseq
    %v187 = vshrl.u32 %v186, 7
    %v188 = vsub.s32 1, %v187
    %v189 = vrot.slane %v180, %v188
    %192 = vmatprep.subr.mxu0 %v149
    %193 = vmatpush1.msra.mxu0 %v148
    %194 = vmatprep.subr.mxu0 %v151
    %195 = vmatpush1.msra.mxu0 %v150
    %196 = vmatprep.subr.mxu0 %v153
    %197 = vmatpush1.msra.mxu0 %v152
    %198 = vmatprep.subr.mxu0 %v155
    %199 = vmatpush1.msra.mxu0 %v154
    %200 = vmatprep.subr.mxu0 %v157
    %201 = vmatpush1.msra.mxu0 %v156
    %202 = vmatprep.subr.mxu0 %v159
    %203 = vmatpush1.msra.mxu0 %v158
    %204 = vmatprep.subr.mxu0 %v161
    %205 = vmatpush1.msra.mxu0 %v160
    %206 = vmatprep.subr.mxu0 %v163
    %207 = vmatpush1.msra.mxu0 %v162
    %208 = vmatprep.subr.mxu0 %v165
    %209 = vmatpush1.msra.mxu0 %v164
    %210 = vmatprep.subr.mxu0 %v167
    %211 = vmatpush1.msra.mxu0 %v166
    %212 = vmatprep.subr.mxu0 %v169
    %213 = vmatpush1.msra.mxu0 %v168
    %214 = vmatprep.subr.mxu0 %v171
    %215 = vmatpush1.msra.mxu0 %v170
    %216 = vmatprep.subr.mxu0 %v173
    %217 = vmatpush1.msra.mxu0 %v172
    %218 = vmatprep.subr.mxu0 %v175
    %219 = vmatpush1.msra.mxu0 %v174
    %220 = vmatprep.subr.mxu0 %v177
    %221 = vmatpush1.msra.mxu0 %v176
    %222 = vmatprep.subr.mxu0 %v179
    %223 = vmatpush1.msra.mxu0 %v178
    %224 = vmatprep.subr.mxu0 0.0
    %225 = vmatpush1.msra.mxu0 0.0
    %226 = vmatprep.subr.mxu0 0.0
    %227 = vmatpush1.msra.mxu0 0.0
    %228 = vmatprep.subr.mxu0 0.0
    %229 = vmatpush1.msra.mxu0 0.0
    %230 = vmatprep.subr.mxu0 0.0
    %231 = vmatpush1.msra.mxu0 0.0
    %232 = vmatprep.subr.mxu0 0.0
    %233 = vmatpush1.msra.mxu0 0.0
    %234 = vmatprep.subr.mxu0 0.0
    %235 = vmatpush1.msra.mxu0 0.0
    %236 = vmatprep.subr.mxu0 0.0
    %237 = vmatpush1.msra.mxu0 0.0
    %238 = vmatprep.subr.mxu0 0.0
    %239 = vmatpush1.msra.mxu0 0.0
    %240 = vmatprep.subr.mxu0 0.0
    %241 = vmatpush1.msra.mxu0 0.0
    %242 = vmatprep.subr.mxu0 0.0
    %243 = vmatpush1.msra.mxu0 0.0
    %244 = vmatprep.subr.mxu0 0.0
    %245 = vmatpush1.msra.mxu0 0.0
    %246 = vmatprep.subr.mxu0 0.0
    %247 = vmatpush1.msra.mxu0 0.0
    %248 = vmatprep.subr.mxu0 0.0
    %249 = vmatpush1.msra.mxu0 0.0
    %250 = vmatprep.subr.mxu0 0.0
    %251 = vmatpush1.msra.mxu0 0.0
    %252 = vmatprep.subr.mxu0 0.0
    %253 = vmatpush1.msra.mxu0 0.0
    %254 = vmatprep.subr.mxu0 0.0
    %255 = vmatpush1.msra.mxu0 0.0
    %256 = vmatprep.mubr.f32.mxu0 0.0
    %257 = vmatmul.mubr.f32.gmra.mrb[0].mxu0 %v147
    %v258 = vpop.f32.mrb[0].mxu0
    %v259 = vadd.f32 %v185, %v258
    %v260 = vpop.f32.mrb[0].mxu0
    %v261 = vadd.f32 %v189, %v260
    %262 = vdwg.mxu0
    %263 = vst [vmem:[#allocation8] sm:$0xff] %v259
    %v264 = vmax.f32 %v261, -10.0
    %v265 = vmin.f32 %v264, 10.0
    %v266 = vmul.f32 %v265, 1.442695
    %v267 = vpow.pop %v266
    %268 = vst [vmem:[#allocation9] sm:$0xff] %v267
    // Predicated region
    $region34: #{encoder_forward.1} parent=1 // pred_check
      _
    $region35: #{encoder_forward.1} parent=1 // pred_check_branch
      %270 = sbr.rel (0) target = $region37
    $region36: #{encoder_forward.1} parent=1 // pred_region
      %s272 = ssub.s32 128, 128
      %273 = vsyncadd [#allocation4], %s272
      %s275 = sshll.u32 [#allocation8], 4
      %s276 = int_to_ptr.vmem [resolvable:$true] %s275
      %278 = dma.vmem_to_hbm [thread:$0]  %s276, 128, %s5, [#allocation4]
    $region37: #{encoder_forward.1} parent=1 // pred_fallthru
      _
    // Predicated region
    $region38: #{encoder_forward.1} parent=1 // pred_check
      _
    $region39: #{encoder_forward.1} parent=1 // pred_check_branch
      %280 = sbr.rel (0) target = $region41
    $region40: #{encoder_forward.1} parent=1 // pred_region
      %s282 = ssub.s32 128, 128
      %283 = vsyncadd [#allocation10], %s282
      %s285 = sshll.u32 [#allocation9], 4
      %s286 = int_to_ptr.vmem [resolvable:$true] %s285
      %288 = dma.vmem_to_hbm [thread:$0]  %s286, 128, %s6, [#allocation10]
    $region41: #{encoder_forward.1} parent=1 // pred_fallthru
      _
    // Predicated region
    $region42: #{encoder_forward.1} parent=1 // pred_check
      _
    $region43: #{encoder_forward.1} parent=1 // pred_check_branch
      %290 = sbr.rel (0) target = $region45
    $region44: #{encoder_forward.1} parent=1 // pred_region
      %291 = dma.done [#allocation4], 128
    $region45: #{encoder_forward.1} parent=1 // pred_fallthru
      _
    // Predicated region
    $region46: #{encoder_forward.1} parent=1 // pred_check
      _
    $region47: #{encoder_forward.1} parent=1 // pred_check_branch
      %293 = sbr.rel (0) target = $region49
    $region48: #{encoder_forward.1} parent=1 // pred_region
      %294 = dma.done [#allocation10], 128
    $region49: #{encoder_forward.1} parent=1 // pred_fallthru
      _
    %295 = vsyncpa [#allocation3], 1
    %296 = vsyncpa [#allocation6], 1
    %297 = vsyncpa [#allocation4], 1
    %298 = vsyncpa [#allocation10], 1

</llo_original>
